<compile_context>
chip_gen: v5e
topology: v5e:2x2
jax: 0.10.0
libtpu: 0.0.40
codegen_flags: <defaults>
</compile_context>

<pallas_src>
import functools

import jax
import jax.numpy as jnp
from jax.experimental import pallas as pl
from jax.experimental.pallas import tpu as pltpu


# --------------------------------------------------------------------------- #
# Kernels
# --------------------------------------------------------------------------- #
def _se_fused_kernel(x_ref, w1_ref, b1_ref, w2_ref, b2_ref, o_ref):
    """One batch element per grid step, full spatial extent resident.

    x_ref : (1, C, HW)   NCHW slab (spatial flattened onto lanes)
    w1_ref: (Cmid, C)    fc1 weight (1x1 conv)
    b1_ref: (Cmid, 1)
    w2_ref: (C, Cmid)    fc2 weight (1x1 conv)
    b2_ref: (C, 1)
    o_ref : (1, C, HW)
    """
    x = x_ref[0]                                                  # (C, HW)
    hw = x.shape[1]

    # Global average pool as an MXU matvec against a ones column.
    ones_col = jnp.ones((hw, 1), jnp.float32)
    pooled = jnp.dot(x, ones_col,
                     preferred_element_type=jnp.float32) * (1.0 / hw)   # (C, 1)

    h = jnp.maximum(
        jnp.dot(w1_ref[...], pooled, preferred_element_type=jnp.float32)
        + b1_ref[...], 0.0)                                       # (Cmid, 1)
    gate = jax.nn.sigmoid(
        jnp.dot(w2_ref[...], h, preferred_element_type=jnp.float32)
        + b2_ref[...])                                            # (C, 1)

    o_ref[0] = x * gate                                           # lane-broadcast over HW


def _se_gate_kernel(x_ref, w1_ref, b1_ref, w2_ref, b2_ref, gate_ref, acc_ref,
                    *, hw_true):
    """Pass 1 of the tiled path: accumulate per-channel sums over HW tiles,
    compute the channel gate at the last tile.

    grid = (N, num_hw_tiles);  x_ref: (1, C, HW_tile);  gate_ref: (1, C, 1)
    acc_ref: VMEM scratch (C, 1), resident across the HW-tile axis.
    """
    t = pl.program_id(1)

    @pl.when(t == 0)
    def _init():
        acc_ref[...] = jnp.zeros_like(acc_ref)

    x = x_ref[0]                                                  # (C, HW_tile)
    ones_col = jnp.ones((x.shape[1], 1), jnp.float32)
    acc_ref[...] += jnp.dot(x, ones_col, preferred_element_type=jnp.float32)

    @pl.when(t == pl.num_programs(1) - 1)
    def _finalize():
        pooled = acc_ref[...] * (1.0 / hw_true)                   # (C, 1)
        h = jnp.maximum(
            jnp.dot(w1_ref[...], pooled, preferred_element_type=jnp.float32)
            + b1_ref[...], 0.0)
        gate_ref[0] = jax.nn.sigmoid(
            jnp.dot(w2_ref[...], h, preferred_element_type=jnp.float32)
            + b2_ref[...])


def _se_apply_kernel(x_ref, gate_ref, o_ref):
    """Pass 2 of the tiled path: apply the channel gate, lane-dense stores."""
    o_ref[0] = x_ref[0] * gate_ref[0]                             # (C, T) * (C, 1)


# --------------------------------------------------------------------------- #
# Wrapper
# --------------------------------------------------------------------------- #
def _round_up(v, m):
    return (v + m - 1) // m * m


def se_module(x, params, *, hw_tile=None, vmem_budget_bytes=24 * 1024 * 1024):
    """SEModule forward.  x: (N, C, H, W) float32, NCHW.  Returns NCHW."""
    N, C, H, W = x.shape
    HW = H * W
    w1, b1 = params["w1"], params["b1"]          # (Cmid, C), (Cmid, 1)
    w2, b2 = params["w2"], params["b2"]          # (C, Cmid), (C, 1)
    Cmid = w1.shape[0]

    x3 = x.reshape(N, C, HW)                     # NCHW with spatial flattened (no transpose)

    # Fused path if the double-buffered (C, HW) in + out slabs fit the budget.
    fused_vmem = 4 * C * HW * 4
    use_fused = (hw_tile is None) and (fused_vmem <= vmem_budget_bytes)

    if use_fused:
        out3 = pl.pallas_call(
            _se_fused_kernel,
            out_shape=jax.ShapeDtypeStruct((N, C, HW), jnp.float32),
            grid_spec=pltpu.PrefetchScalarGridSpec(
                num_scalar_prefetch=0,
                grid=(N,),
                in_specs=[
                    pl.BlockSpec((1, C, HW), lambda n: (n, 0, 0)),
                    pl.BlockSpec((Cmid, C), lambda n: (0, 0)),
                    pl.BlockSpec((Cmid, 1), lambda n: (0, 0)),
                    pl.BlockSpec((C, Cmid), lambda n: (0, 0)),
                    pl.BlockSpec((C, 1), lambda n: (0, 0)),
                ],
                out_specs=pl.BlockSpec((1, C, HW), lambda n: (n, 0, 0)),
            ),
            compiler_params=pltpu.CompilerParams(
                dimension_semantics=("parallel",)),
        )(x3, w1, b1, w2, b2)
        return out3.reshape(N, C, H, W)

    # ------------------- tiled two-pass path (large C*HW) ------------------- #
    if hw_tile is None:
        # ~4 live (C, hw_tile) f32 buffers in pass 2 (double-buffered in + out).
        t = vmem_budget_bytes // (4 * C * 4)
        hw_tile = max(128, (t // 128) * 128)
    hw_tile = min(hw_tile, _round_up(HW, 128))
    hw_pad = _round_up(HW, hw_tile)
    num_tiles = hw_pad // hw_tile

    x3p = jnp.pad(x3, ((0, 0), (0, 0), (0, hw_pad - HW))) if hw_pad != HW else x3

    # Pass 1: pooled sums over HW tiles -> (N, C, 1) channel gate.
    gate = pl.pallas_call(
        functools.partial(_se_gate_kernel, hw_true=HW),
        out_shape=jax.ShapeDtypeStruct((N, C, 1), jnp.float32),
        grid_spec=pltpu.PrefetchScalarGridSpec(
            num_scalar_prefetch=0,
            grid=(N, num_tiles),
            in_specs=[
                pl.BlockSpec((1, C, hw_tile), lambda n, t: (n, 0, t)),
                pl.BlockSpec((Cmid, C), lambda n, t: (0, 0)),
                pl.BlockSpec((Cmid, 1), lambda n, t: (0, 0)),
                pl.BlockSpec((C, Cmid), lambda n, t: (0, 0)),
                pl.BlockSpec((C, 1), lambda n, t: (0, 0)),
            ],
            out_specs=pl.BlockSpec((1, C, 1), lambda n, t: (n, 0, 0)),
            scratch_shapes=[pltpu.VMEM((C, 1), jnp.float32)],
        ),
        compiler_params=pltpu.CompilerParams(
            dimension_semantics=("parallel", "arbitrary")),
    )(x3p, w1, b1, w2, b2)

    # Pass 2: apply the gate tile by tile (lane-dense, fully parallel grid).
    out3p = pl.pallas_call(
        _se_apply_kernel,
        out_shape=jax.ShapeDtypeStruct((N, C, hw_pad), jnp.float32),
        grid_spec=pltpu.PrefetchScalarGridSpec(
            num_scalar_prefetch=0,
            grid=(N, num_tiles),
            in_specs=[
                pl.BlockSpec((1, C, hw_tile), lambda n, t: (n, 0, t)),
                pl.BlockSpec((1, C, 1), lambda n, t: (n, 0, 0)),
            ],
            out_specs=pl.BlockSpec((1, C, hw_tile), lambda n, t: (n, 0, t)),
        ),
        compiler_params=pltpu.CompilerParams(
            dimension_semantics=("parallel", "parallel")),
    )(x3p, gate)

    out3 = out3p[:, :, :HW] if hw_pad != HW else out3p
    return out3.reshape(N, C, H, W)


# --------------------------------------------------------------------------- #
# Pure-JAX reference (matches the PyTorch SEModule forward)
# --------------------------------------------------------------------------- #
def _reference(x, params):
    pooled = jnp.mean(x, axis=(2, 3))                                  # (N, C)
    h = jnp.maximum(pooled @ params["w1"].T + params["b1"][:, 0], 0.0)  # fc1 + ReLU
    g = jax.nn.sigmoid(h @ params["w2"].T + params["b2"][:, 0])         # fc2 + sigmoid
    return x * g[:, :, None, None]


if __name__ == "__main__":
    key = jax.random.PRNGKey(0)
    kx, k1, k2, k3, k4 = jax.random.split(key, 5)

    # SEModule(channels=16, reduction=2) on a (2, 16, 16, 16) NCHW input.
    N, C, H, W = 2, 16, 16, 16
    reduction = 2
    Cmid = C // reduction

    x = jax.random.normal(kx, (N, C, H, W), jnp.float32)
    params = {
        "w1": 0.2 * jax.random.normal(k1, (Cmid, C), jnp.float32),   # fc1 (1x1 conv) weight
        "b1": 0.2 * jax.random.normal(k2, (Cmid, 1), jnp.float32),   # fc1 bias
        "w2": 0.2 * jax.random.normal(k3, (C, Cmid), jnp.float32),   # fc2 (1x1 conv) weight
        "b2": 0.2 * jax.random.normal(k4, (C, 1), jnp.float32),      # fc2 bias
    }

    ref = _reference(x, params)

    # Fused single-read path.
    out = jax.block_until_ready(se_module(x, params))
    assert out.shape == (N, C, H, W), out.shape
    assert jnp.allclose(out, ref, rtol=1e-4, atol=1e-4), \
        float(jnp.max(jnp.abs(out - ref)))

    # Tiled two-pass path (forced small HW tile to exercise it).
    out_tiled = jax.block_until_ready(se_module(x, params, hw_tile=128))
    assert jnp.allclose(out_tiled, ref, rtol=1e-4, atol=1e-4), \
        float(jnp.max(jnp.abs(out_tiled - ref)))

    print("KERNEL_OK")
</pallas_src>

<mosaic_0001>
module attributes {stable_mosaic.version = 11 : i64} {
  func.func @_se_fused_kernel(%arg0: i32, %arg1: memref<1x16x256xf32, #tpu.memory_space<vmem>>, %arg2: memref<8x16xf32, #tpu.memory_space<vmem>>, %arg3: memref<8x1xf32, #tpu.memory_space<vmem>>, %arg4: memref<16x8xf32, #tpu.memory_space<vmem>>, %arg5: memref<16x1xf32, #tpu.memory_space<vmem>>, %arg6: memref<1x16x256xf32, #tpu.memory_space<vmem>>) attributes {dimension_semantics = [#tpu.dimension_semantics<parallel>], iteration_bounds = array<i64: 2>, scalar_prefetch = 0 : i64, scratch_operands = 0 : i64, tpu.core_type = #tpu.core_type<tc>, window_params = [{transform_indices = @transform_0, window_bounds = array<i64: 1, 16, 256>}, {pipeline_mode = #tpu.pipeline_mode<synchronous>, transform_indices = @transform_1, window_bounds = array<i64: 8, 16>}, {pipeline_mode = #tpu.pipeline_mode<synchronous>, transform_indices = @transform_2, window_bounds = array<i64: 8, 1>}, {pipeline_mode = #tpu.pipeline_mode<synchronous>, transform_indices = @transform_3, window_bounds = array<i64: 16, 8>}, {pipeline_mode = #tpu.pipeline_mode<synchronous>, transform_indices = @transform_4, window_bounds = array<i64: 16, 1>}, {transform_indices = @transform_5, window_bounds = array<i64: 1, 16, 256>}]} {
    %c0 = arith.constant 0 : index
    %c0_0 = arith.constant 0 : index
    %c0_1 = arith.constant 0 : index
    %0 = vector.load %arg1[%c0, %c0_0, %c0_1] : memref<1x16x256xf32, #tpu.memory_space<vmem>>, vector<1x16x256xf32>
    %1 = vector.shape_cast %0 : vector<1x16x256xf32> to vector<16x256xf32>
    %cst = arith.constant 1.000000e+00 : f32
    %2 = vector.broadcast %cst : f32 to vector<256x1xf32>
    %cst_2 = arith.constant dense<0.000000e+00> : vector<16x1xf32>
    %3 = tpu.matmul %1, %2, %cst_2 {dimension_numbers = #tpu.dot_dimension_numbers<[1], [0], [0], [1], [0, 0, 1, 1], [], []>} : vector<16x256xf32>, vector<256x1xf32>, vector<16x1xf32> -> vector<16x1xf32>
    %cst_3 = arith.constant 3.906250e-03 : f32
    %4 = vector.broadcast %cst_3 : f32 to vector<16x1xf32>
    %5 = arith.mulf %3, %4 : vector<16x1xf32>
    %c0_4 = arith.constant 0 : index
    %c0_5 = arith.constant 0 : index
    %6 = vector.load %arg2[%c0_4, %c0_5] : memref<8x16xf32, #tpu.memory_space<vmem>>, vector<8x16xf32>
    %cst_6 = arith.constant dense<0.000000e+00> : vector<8x1xf32>
    %7 = tpu.matmul %6, %5, %cst_6 {dimension_numbers = #tpu.dot_dimension_numbers<[1], [0], [0], [1], [0, 0, 1, 1], [], []>} : vector<8x16xf32>, vector<16x1xf32>, vector<8x1xf32> -> vector<8x1xf32>
    %c0_7 = arith.constant 0 : index
    %c0_8 = arith.constant 0 : index
    %8 = vector.load %arg3[%c0_7, %c0_8] : memref<8x1xf32, #tpu.memory_space<vmem>>, vector<8x1xf32>
    %9 = arith.addf %7, %8 : vector<8x1xf32>
    %cst_9 = arith.constant 0.000000e+00 : f32
    %10 = vector.broadcast %cst_9 : f32 to vector<8x1xf32>
    %11 = arith.maximumf %9, %10 : vector<8x1xf32>
    %c0_10 = arith.constant 0 : index
    %c0_11 = arith.constant 0 : index
    %12 = vector.load %arg4[%c0_10, %c0_11] : memref<16x8xf32, #tpu.memory_space<vmem>>, vector<16x8xf32>
    %cst_12 = arith.constant dense<0.000000e+00> : vector<16x1xf32>
    %13 = tpu.matmul %12, %11, %cst_12 {dimension_numbers = #tpu.dot_dimension_numbers<[1], [0], [0], [1], [0, 0, 1, 1], [], []>} : vector<16x8xf32>, vector<8x1xf32>, vector<16x1xf32> -> vector<16x1xf32>
    %c0_13 = arith.constant 0 : index
    %c0_14 = arith.constant 0 : index
    %14 = vector.load %arg5[%c0_13, %c0_14] : memref<16x1xf32, #tpu.memory_space<vmem>>, vector<16x1xf32>
    %15 = arith.addf %13, %14 : vector<16x1xf32>
    %16 = arith.negf %15 : vector<16x1xf32>
    %17 = math.exp %16 : vector<16x1xf32>
    %cst_15 = arith.constant 1.000000e+00 : f32
    %18 = vector.broadcast %cst_15 : f32 to vector<16x1xf32>
    %19 = arith.addf %18, %17 : vector<16x1xf32>
    %20 = arith.divf %18, %19 : vector<16x1xf32>
    %21 = vector.broadcast %20 : vector<16x1xf32> to vector<16x256xf32>
    %22 = arith.mulf %1, %21 : vector<16x256xf32>
    %c0_16 = arith.constant 0 : index
    %c0_17 = arith.constant 0 : index
    %c0_18 = arith.constant 0 : index
    %23 = vector.load %arg6[%c0_16, %c0_17, %c0_18] : memref<1x16x256xf32, #tpu.memory_space<vmem>>, vector<1x16x256xf32>
    %24 = vector.shape_cast %23 : vector<1x16x256xf32> to vector<16x256xf32>
    %25 = vector.shape_cast %22 : vector<16x256xf32> to vector<1x16x256xf32>
    tpu.vector_store %arg6[%c0_16, %c0_17, %c0_18], %25 {strides = array<i32>} : memref<1x16x256xf32, #tpu.memory_space<vmem>>, vector<1x16x256xf32>,
    return
  }
  func.func @transform_0(%arg0: i32) -> (i32, i32, i32) {
    %c0_i32 = arith.constant 0 : i32
    %c0_i32_0 = arith.constant 0 : i32
    %c0_i32_1 = arith.constant 0 : i32
    return %arg0, %c0_i32, %c0_i32_0 : i32, i32, i32
  }
  func.func @transform_1(%arg0: i32) -> (i32, i32) {
    %c0_i32 = arith.constant 0 : i32
    %c0_i32_0 = arith.constant 0 : i32
    %c0_i32_1 = arith.constant 0 : i32
    return %c0_i32, %c0_i32_0 : i32, i32
  }
  func.func @transform_2(%arg0: i32) -> (i32, i32) {
    %c0_i32 = arith.constant 0 : i32
    %c0_i32_0 = arith.constant 0 : i32
    %c0_i32_1 = arith.constant 0 : i32
    return %c0_i32, %c0_i32_0 : i32, i32
  }
  func.func @transform_3(%arg0: i32) -> (i32, i32) {
    %c0_i32 = arith.constant 0 : i32
    %c0_i32_0 = arith.constant 0 : i32
    %c0_i32_1 = arith.constant 0 : i32
    return %c0_i32, %c0_i32_0 : i32, i32
  }
  func.func @transform_4(%arg0: i32) -> (i32, i32) {
    %c0_i32 = arith.constant 0 : i32
    %c0_i32_0 = arith.constant 0 : i32
    %c0_i32_1 = arith.constant 0 : i32
    return %c0_i32, %c0_i32_0 : i32, i32
  }
  func.func @transform_5(%arg0: i32) -> (i32, i32, i32) {
    %c0_i32 = arith.constant 0 : i32
    %c0_i32_0 = arith.constant 0 : i32
    %c0_i32_1 = arith.constant 0 : i32
    return %arg0, %c0_i32, %c0_i32_0 : i32, i32, i32
  }
}

</mosaic_0001>

<llo_original>
// kernel: tpu_custom_call.1
$region0: #{tpu_custom_call.1}
  #allocation0 [shape = 'u32[]', space=smem, size = 0x4, offset = 0x4, fixed_abs, tag = 'smem constant byte address 0x4 - core index']
  #allocation1 [shape = 'u32[72,128]{1,0:T(1,128)}', space=vmem, size = 0x9000, scoped, tag = 'internal scratch']
  %s0 = inlined_call_operand.hbm [shape: f32[2,16,256], index: 0, kind: input, shape index: {}]
  %s1 = inlined_call_operand.vmem [shape: f32[8,16], index: 1, kind: input, shape index: {}]
  %s2 = inlined_call_operand.vmem [shape: f32[8,1], index: 2, kind: input, shape index: {}]
  %s3 = inlined_call_operand.vmem [shape: f32[16,8], index: 3, kind: input, shape index: {}]
  %s4 = inlined_call_operand.vmem [shape: f32[16,1], index: 4, kind: input, shape index: {}]
  %s5 = inlined_call_operand.hbm [shape: f32[2,16,256], index: 5, kind: output, shape index: {}]
  %s6 = sld [smem:[#allocation0]]
  $region57: #{tpu_custom_call.1} parent=0
    _
  %s8 = ssub.s32 1, %s6
  %s9 = scalar_select 0, %s8, %s6
  $region1: #{tpu_custom_call.1} parent=0
    #allocation2 [shape = 'u8[32768]{0}', space=vmem, size = 0x8000, scoped, tag = 'input window, operand 0']
    #allocation3 [shape = 's32[2]{0}', space=sflag, size = 0x8, scoped, tag = 'scoped memory for tpu_custom_call.1']
    #allocation4 [shape = 's32[2]{0}', space=sflag, size = 0x8, scoped, tag = 'scoped memory for tpu_custom_call.1']
    #allocation5 [shape = 'u8[32768]{0}', space=vmem, size = 0x8000, scoped, tag = 'output window, operand 0']
    %10 = vsyncpa [#allocation3], 0
    %s11 = scalar_lea.sflag [#allocation3], 1
    %12 = vsyncpa %s11, 0
    %13 = vsyncpa [#allocation4], 0
    %s14 = scalar_lea.sflag [#allocation4], 1
    %15 = vsyncpa %s14, 0
    loop: start=0, step=1, limit=4
    $region2: #{tpu_custom_call.1} parent=1 // loop_pre_header
      _
    $region3: #{tpu_custom_call.1} parent=1 // loop_header
      %s17 = sphi 0, %s21
      %p18 = scmp.ge.s32.totalorder %s17, 4
      %s27 = sphi 0, %s29
      %s30 = sphi 0, %s27
      %s31 = sphi 0, %s30
      %s47 = sphi 0, %s31
      %s51 = sphi 0, %s51
      %s53 = sphi 0, %s51
      %s54 = sphi 0, %s53
      %s68 = sphi 0, %s54
      %s72 = sphi 0, %s72
      %s74 = sphi 0, %s72
      %s75 = sphi 0, %s74
      %s89 = sphi 0, %s75
      %s93 = sphi 0, %s93
      %s95 = sphi 0, %s93
      %s96 = sphi 0, %s95
      %s110 = sphi 0, %s96
      %s114 = sphi 0, %s114
      %s116 = sphi 0, %s114
      %s117 = sphi 0, %s116
      %s131 = sphi 0, %s117
      %s137 = sphi 0, %s139
      %s140 = sphi 0, %s137
      %s141 = sphi 0, %s140
      %s157 = sphi 0, %s141
    $region4: #{tpu_custom_call.1} parent=1 // loop_header_branch
      %20 = sbr.rel (%p18) target = $region8
    $region5: #{tpu_custom_call.1} parent=1 // loop_body
      %s22 = ssub.s32 %s17, 1
      %s23 = ssub.s32 %s17, 2
      %s24 = sadd.s32 %s17, 1
      %s25 = ssub.s32 %s17, %s24
      %p26 = scmp.eq.s32.totalorder %s25, 0
      %s28 = sadd.s32 %s27, 1
      %s29 = scalar_select %p26, %s27, %s28
      %p32 = pneg %p26
      %p33 = scmp.eq.s32.totalorder %s17, 1
      %p34 = por %p32, %p33
      %p35 = scmp.ne.s32.totalorder %s27, %s30
      %p36 = scmp.eq.s32.totalorder %s17, 0
      %p37 = por %p35, %p36
      %p38 = scmp.ne.s32.totalorder %s27, %s30
      %p39 = scmp.eq.s32.totalorder %s22, 1
      %p40 = por %p38, %p39
      %p41 = scmp.ne.s32.totalorder %s30, %s31
      %p42 = scmp.eq.s32.totalorder %s22, 0
      %p43 = por %p41, %p42
      %p44 = scmp.ne.s32.totalorder %s30, %s31
      %p45 = scmp.eq.s32.totalorder %s23, 1
      %p46 = por %p44, %p45
      %p48 = scmp.ne.s32.totalorder %s31, %s47
      %p49 = scmp.eq.s32.totalorder %s23, 0
      %p50 = por %p48, %p49
      %s52 = sadd.s32 %s51, 1
      %p55 = scmp.eq.s32.totalorder %s17, 1
      %p56 = scmp.ne.s32.totalorder %s51, %s53
      %p57 = scmp.eq.s32.totalorder %s17, 0
      %p58 = por %p56, %p57
      %p59 = scmp.ne.s32.totalorder %s51, %s53
      %p60 = scmp.eq.s32.totalorder %s22, 1
      %p61 = por %p59, %p60
      %p62 = scmp.ne.s32.totalorder %s53, %s54
      %p63 = scmp.eq.s32.totalorder %s22, 0
      %p64 = por %p62, %p63
      %p65 = scmp.ne.s32.totalorder %s53, %s54
      %p66 = scmp.eq.s32.totalorder %s23, 1
      %p67 = por %p65, %p66
      %p69 = scmp.ne.s32.totalorder %s54, %s68
      %p70 = scmp.eq.s32.totalorder %s23, 0
      %p71 = por %p69, %p70
      %s73 = sadd.s32 %s72, 1
      %p76 = scmp.eq.s32.totalorder %s17, 1
      %p77 = scmp.ne.s32.totalorder %s72, %s74
      %p78 = scmp.eq.s32.totalorder %s17, 0
      %p79 = por %p77, %p78
      %p80 = scmp.ne.s32.totalorder %s72, %s74
      %p81 = scmp.eq.s32.totalorder %s22, 1
      %p82 = por %p80, %p81
      %p83 = scmp.ne.s32.totalorder %s74, %s75
      %p84 = scmp.eq.s32.totalorder %s22, 0
      %p85 = por %p83, %p84
      %p86 = scmp.ne.s32.totalorder %s74, %s75
      %p87 = scmp.eq.s32.totalorder %s23, 1
      %p88 = por %p86, %p87
      %p90 = scmp.ne.s32.totalorder %s75, %s89
      %p91 = scmp.eq.s32.totalorder %s23, 0
      %p92 = por %p90, %p91
      %s94 = sadd.s32 %s93, 1
      %p97 = scmp.eq.s32.totalorder %s17, 1
      %p98 = scmp.ne.s32.totalorder %s93, %s95
      %p99 = scmp.eq.s32.totalorder %s17, 0
      %p100 = por %p98, %p99
      %p101 = scmp.ne.s32.totalorder %s93, %s95
      %p102 = scmp.eq.s32.totalorder %s22, 1
      %p103 = por %p101, %p102
      %p104 = scmp.ne.s32.totalorder %s95, %s96
      %p105 = scmp.eq.s32.totalorder %s22, 0
      %p106 = por %p104, %p105
      %p107 = scmp.ne.s32.totalorder %s95, %s96
      %p108 = scmp.eq.s32.totalorder %s23, 1
      %p109 = por %p107, %p108
      %p111 = scmp.ne.s32.totalorder %s96, %s110
      %p112 = scmp.eq.s32.totalorder %s23, 0
      %p113 = por %p111, %p112
      %s115 = sadd.s32 %s114, 1
      %p118 = scmp.eq.s32.totalorder %s17, 1
      %p119 = scmp.ne.s32.totalorder %s114, %s116
      %p120 = scmp.eq.s32.totalorder %s17, 0
      %p121 = por %p119, %p120
      %p122 = scmp.ne.s32.totalorder %s114, %s116
      %p123 = scmp.eq.s32.totalorder %s22, 1
      %p124 = por %p122, %p123
      %p125 = scmp.ne.s32.totalorder %s116, %s117
      %p126 = scmp.eq.s32.totalorder %s22, 0
      %p127 = por %p125, %p126
      %p128 = scmp.ne.s32.totalorder %s116, %s117
      %p129 = scmp.eq.s32.totalorder %s23, 1
      %p130 = por %p128, %p129
      %p132 = scmp.ne.s32.totalorder %s117, %s131
      %p133 = scmp.eq.s32.totalorder %s23, 0
      %p134 = por %p132, %p133
      %s135 = ssub.s32 %s17, %s24
      %p136 = scmp.eq.s32.totalorder %s135, 0
      %s138 = sadd.s32 %s137, 1
      %s139 = scalar_select %p136, %s137, %s138
      %p142 = pneg %p136
      %p143 = scmp.eq.s32.totalorder %s17, 1
      %p144 = por %p142, %p143
      %p145 = scmp.ne.s32.totalorder %s137, %s140
      %p146 = scmp.eq.s32.totalorder %s17, 0
      %p147 = por %p145, %p146
      %p148 = scmp.ne.s32.totalorder %s137, %s140
      %p149 = scmp.eq.s32.totalorder %s22, 1
      %p150 = por %p148, %p149
      %p151 = scmp.ne.s32.totalorder %s140, %s141
      %p152 = scmp.eq.s32.totalorder %s22, 0
      %p153 = por %p151, %p152
      %p154 = scmp.ne.s32.totalorder %s140, %s141
      %p155 = scmp.eq.s32.totalorder %s23, 1
      %p156 = por %p154, %p155
      %p158 = scmp.ne.s32.totalorder %s141, %s157
      %p159 = scmp.eq.s32.totalorder %s23, 0
      %p160 = por %p158, %p159
      %p161 = scmp.le.s32.totalorder 1, %s17
      %p162 = scmp.lt.s32.totalorder %s17, 3
      %p163 = pnand %p161, %p162
      %p164 = pneg %p163
      // Predicated region
      $region9: #{tpu_custom_call.1} parent=5 // pred_check
        _
      $region10: #{tpu_custom_call.1} parent=5 // pred_check_branch
        %166 = sbr.rel (%p163) target = $region12
      $region11: #{tpu_custom_call.1} parent=5 // pred_region
        %s167 = ssub.s32 %s17, 1
        // Predicated region
        $region13: #{tpu_custom_call.1} parent=11 // pred_check
          %p168 = pneg %p64
        $region14: #{tpu_custom_call.1} parent=11 // pred_check_branch
          %170 = sbr.rel (%p168) target = $region16
        $region15: #{tpu_custom_call.1} parent=11 // pred_region
          _
        $region16: #{tpu_custom_call.1} parent=11 // pred_fallthru
          _
        // Predicated region
        $region17: #{tpu_custom_call.1} parent=11 // pred_check
          %p171 = pneg %p85
        $region18: #{tpu_custom_call.1} parent=11 // pred_check_branch
          %173 = sbr.rel (%p171) target = $region20
        $region19: #{tpu_custom_call.1} parent=11 // pred_region
          _
        $region20: #{tpu_custom_call.1} parent=11 // pred_fallthru
          _
        // Predicated region
        $region21: #{tpu_custom_call.1} parent=11 // pred_check
          %p174 = pneg %p106
        $region22: #{tpu_custom_call.1} parent=11 // pred_check_branch
          %176 = sbr.rel (%p174) target = $region24
        $region23: #{tpu_custom_call.1} parent=11 // pred_region
          _
        $region24: #{tpu_custom_call.1} parent=11 // pred_fallthru
          _
        // Predicated region
        $region25: #{tpu_custom_call.1} parent=11 // pred_check
          %p177 = pneg %p127
        $region26: #{tpu_custom_call.1} parent=11 // pred_check_branch
          %179 = sbr.rel (%p177) target = $region28
        $region27: #{tpu_custom_call.1} parent=11 // pred_region
          _
        $region28: #{tpu_custom_call.1} parent=11 // pred_fallthru
          _
      $region12: #{tpu_custom_call.1} parent=5 // pred_fallthru
        _
      %p180 = scmp.lt.s32.totalorder %s17, 2
      // Predicated region
      $region29: #{tpu_custom_call.1} parent=5 // pred_check
        %p181 = pneg %p180
      $region30: #{tpu_custom_call.1} parent=5 // pred_check_branch
        %183 = sbr.rel (%p181) target = $region32
      $region31: #{tpu_custom_call.1} parent=5 // pred_region
        // Predicated region
        $region33: #{tpu_custom_call.1} parent=31 // pred_check
          %p184 = pneg %p37
        $region34: #{tpu_custom_call.1} parent=31 // pred_check_branch
          %186 = sbr.rel (%p184) target = $region36
        $region35: #{tpu_custom_call.1} parent=31 // pred_region
          %s187 = sand.u32 %s27, 1
          %s188 = scalar_lea.sflag [#allocation3], %s187
          %s189 = sand.u32 %s27, 1
          %s190 = smul.addr %s189, 32
          %s191 = scalar_lea.vmem [#allocation2], %s190
          %193 = vsyncadd %s188, 0
          %s194 = smul.addr %s17, 4
          %s195 = smul.addr %s194, 8
          %s196 = scalar_lea.hbm %s0, %s195
          %s197 = sshll.u32 %s196, 4
          %s198 = int_to_ptr.hbm [resolvable:$true] %s197
          %s199 = sshll.u32 %s191, 4
          %s200 = int_to_ptr.vmem [resolvable:$true] %s199
          %205 = dma.hbm_to_vmem [thread:$0]  %s198, 512, %s200, %s188, 256, 256, 16
        $region36: #{tpu_custom_call.1} parent=31 // pred_fallthru
          _
      $region32: #{tpu_custom_call.1} parent=5 // pred_fallthru
        _
      %p206 = scmp.le.s32.totalorder 1, %s17
      %p207 = scmp.lt.s32.totalorder %s17, 3
      %p208 = pnand %p206, %p207
      %p209 = pneg %p208
      // Predicated region
      $region37: #{tpu_custom_call.1} parent=5 // pred_check
        _
      $region38: #{tpu_custom_call.1} parent=5 // pred_check_branch
        %211 = sbr.rel (%p208) target = $region40
      $region39: #{tpu_custom_call.1} parent=5 // pred_region
        %s212 = ssub.s32 %s17, 1
        %s213 = sand.u32 %s30, 1
        %s214 = scalar_lea.sflag [#allocation3], %s213
        %s215 = sand.u32 %s30, 1
        %s216 = smul.addr %s215, 32
        %s217 = scalar_lea.vmem [#allocation2], %s216
        // Predicated region
        $region41: #{tpu_custom_call.1} parent=39 // pred_check
          %p218 = pneg %p43
        $region42: #{tpu_custom_call.1} parent=39 // pred_check_branch
          %220 = sbr.rel (%p218) target = $region44
        $region43: #{tpu_custom_call.1} parent=39 // pred_region
          %222 = dma.done %s214, 512
        $region44: #{tpu_custom_call.1} parent=39 // pred_fallthru
          _
        %s223 = sand.u32 %s30, 1
        %s224 = scalar_lea.sflag [#allocation3], %s223
        %s225 = sand.u32 %s30, 1
        %s226 = smul.addr %s225, 32
        %s227 = scalar_lea.vmem [#allocation2], %s226
        %p228 = pneg %p43
        %p229 = pneg %p40
        %p230 = pneg %p64
        %p231 = pneg %p61
        %p232 = pneg %p85
        %p233 = pneg %p82
        %p234 = pneg %p106
        %p235 = pneg %p103
        %p236 = pneg %p127
        %p237 = pneg %p124
        %p238 = pneg %p153
        %p239 = pneg %p150
        %s240 = sand.u32 %s140, 1
        %s241 = scalar_lea.sflag [#allocation4], %s240
        %s242 = sand.u32 %s140, 1
        %s243 = smul.addr %s242, 32
        %s244 = scalar_lea.vmem [#allocation5], %s243
        %v245 = vld [vmem:[%s217] sm:$0xff]
        %v246 = vld [vmem:[%s217 + $0x8] sm:$0xff]
        %v247 = vld [vmem:[%s217 + $0x10] sm:$0xff]
        %v248 = vld [vmem:[%s217 + $0x18] sm:$0xff]
        %249 = vmatpush.msra.mxu0 1.0
        %250 = vmatpush.msra.mxu0 1.0
        %251 = vmatpush.msra.mxu0 1.0
        %252 = vmatpush.msra.mxu0 1.0
        %253 = vmatpush.msra.mxu0 1.0
        %254 = vmatpush.msra.mxu0 1.0
        %255 = vmatpush.msra.mxu0 1.0
        %256 = vmatpush.msra.mxu0 1.0
        %257 = vmatpush.msra.mxu0 1.0
        %258 = vmatpush.msra.mxu0 1.0
        %259 = vmatpush.msra.mxu0 1.0
        %260 = vmatpush.msra.mxu0 1.0
        %261 = vmatpush.msra.mxu0 1.0
        %262 = vmatpush.msra.mxu0 1.0
        %263 = vmatpush.msra.mxu0 1.0
        %264 = vmatpush.msra.mxu0 1.0
        %265 = vmatmul.f32.gmra.mxu0 %v245
        %v266 = vpop.f32.mrf.mxu0
        %v267 = vadd.f32 0.0, %v266
        %268 = vmatmul.f32.gmra.mxu0 %v247
        %v269 = vpop.f32.mrf.mxu0
        %v270 = vadd.f32 0.0, %v269
        %271 = vdwg.mxu0
        %272 = vmatpush.msra.mxu0 1.0
        %273 = vmatpush.msra.mxu0 1.0
        %274 = vmatpush.msra.mxu0 1.0
        %275 = vmatpush.msra.mxu0 1.0
        %276 = vmatpush.msra.mxu0 1.0
        %277 = vmatpush.msra.mxu0 1.0
        %278 = vmatpush.msra.mxu0 1.0
        %279 = vmatpush.msra.mxu0 1.0
        %280 = vmatpush.msra.mxu0 1.0
        %281 = vmatpush.msra.mxu0 1.0
        %282 = vmatpush.msra.mxu0 1.0
        %283 = vmatpush.msra.mxu0 1.0
        %284 = vmatpush.msra.mxu0 1.0
        %285 = vmatpush.msra.mxu0 1.0
        %286 = vmatpush.msra.mxu0 1.0
        %287 = vmatpush.msra.mxu0 1.0
        %288 = vmatmul.f32.gmra.mxu0 %v246
        %v289 = vpop.f32.mrf.mxu0
        %v290 = vadd.f32 %v267, %v289
        %291 = vmatmul.f32.gmra.mxu0 %v248
        %v292 = vpop.f32.mrf.mxu0
        %v293 = vadd.f32 %v270, %v292
        %294 = vdwg.mxu0
        %v295 = vmul.f32 %v290, 0.00390625
        %v296 = vmul.f32 %v293, 0.00390625
        %v297 = vld [vmem:[%s1] sm:$0xff]
        %v298 = vld [vmem:[%s2] sm:$0xff]
        %vm299 = vcmask 130048
        %v301 = vsel %vm299, %v297, 0
        %303 = vmatpush.msra.mxu0 0.0
        %304 = vmatpush.msra.mxu0 0.0
        %305 = vmatpush.msra.mxu0 0.0
        %306 = vmatpush.msra.mxu0 0.0
        %307 = vmatpush.msra.mxu0 0.0
        %308 = vmatpush.msra.mxu0 0.0
        %309 = vmatpush.msra.mxu0 0.0
        %310 = vmatpush.msra.mxu0 0.0
        %311 = vmatpush.msra.mxu0 0.0
        %312 = vmatpush.msra.mxu0 0.0
        %313 = vmatpush.msra.mxu0 0.0
        %314 = vmatpush.msra.mxu0 0.0
        %315 = vmatpush.msra.mxu0 0.0
        %316 = vmatpush.msra.mxu0 0.0
        %317 = vmatpush.msra.mxu0 %v296
        %318 = vmatpush.msra.mxu0 %v295
        %319 = vmatmul.f32.gmra.mxu0 %v301
        %v320 = vpop.f32.mrf.mxu0
        %v321 = vadd.f32 %v298, %v320
        %322 = vdwg.mxu0
        %v323 = vmax.f32 %v321, 0.0
        %v324 = vld [vmem:[%s3] sm:$0xff]
        %v325 = vld [vmem:[%s3 + $0x8] sm:$0xff]
        %v326 = vld [vmem:[%s4] sm:$0xff]
        %v327 = vld [vmem:[%s4 + $0x8] sm:$0xff]
        %vm328 = vcmask 64512
        %v330 = vsel %vm328, %v324, 0
        %v333 = vsel %vm328, %v325, 0
        %335 = vmatpush.msra.mxu0 0.0
        %336 = vmatpush.msra.mxu0 0.0
        %337 = vmatpush.msra.mxu0 0.0
        %338 = vmatpush.msra.mxu0 0.0
        %339 = vmatpush.msra.mxu0 0.0
        %340 = vmatpush.msra.mxu0 0.0
        %341 = vmatpush.msra.mxu0 0.0
        %342 = vmatpush.msra.mxu0 0.0
        %343 = vmatpush.msra.mxu0 0.0
        %344 = vmatpush.msra.mxu0 0.0
        %345 = vmatpush.msra.mxu0 0.0
        %346 = vmatpush.msra.mxu0 0.0
        %347 = vmatpush.msra.mxu0 0.0
        %348 = vmatpush.msra.mxu0 0.0
        %349 = vmatpush.msra.mxu0 0.0
        %350 = vmatpush.msra.mxu0 %v323
        %351 = vmatmul.f32.gmra.mxu0 %v330
        %v352 = vpop.f32.mrf.mxu0
        %v353 = vadd.f32 %v326, %v352
        %354 = vmatmul.f32.gmra.mxu0 %v333
        %v355 = vpop.f32.mrf.mxu0
        %v356 = vadd.f32 %v327, %v355
        %357 = vdwg.mxu0
        %v358 = vxor.u32 %v353, 2147483648
        %v359 = vxor.u32 %v356, 2147483648
        %v360 = vmul.f32 %v358, 1.442695
        %v361 = vpow.pop %v360
        %v362 = vmul.f32 %v359, 1.442695
        %v363 = vpow.pop %v362
        %v364 = vadd.f32 %v361, 1.0
        %v365 = vadd.f32 %v363, 1.0
        %v366 = vrcp.pop %v364
        %v367 = vmul.f32 %v364, %v366
        %v368 = vsub.f32 1.0, %v367
        %v369 = vmul.f32 %v366, %v368
        %v370 = vadd.f32 %v366, %v369
        %vm371 = vweird.f32 %v364
        %vm372 = vweird.f32 %v366
        %vm373 = vmor %vm371, %vm372
        %v374 = vsel %vm373, %v366, %v370
        %v375 = vand.u32 2147483647, %v364
        %vm376 = vcmp.eq.f32.partialorder %v375, 8.507059e+37
        %v377 = vand.u32 %v364, 2147483648
        %v378 = vor.u32 1.1754944e-38, %v377
        %v379 = vsel %vm376, %v378, %v374
        %v380 = vmul.f32 1.0, %v379
        %v381 = vrcp.pop %v365
        %v382 = vmul.f32 %v365, %v381
        %v383 = vsub.f32 1.0, %v382
        %v384 = vmul.f32 %v381, %v383
        %v385 = vadd.f32 %v381, %v384
        %vm386 = vweird.f32 %v365
        %vm387 = vweird.f32 %v381
        %vm388 = vmor %vm386, %vm387
        %v389 = vsel %vm388, %v381, %v385
        %v390 = vand.u32 2147483647, %v365
        %vm391 = vcmp.eq.f32.partialorder %v390, 8.507059e+37
        %v392 = vand.u32 %v365, 2147483648
        %v393 = vor.u32 1.1754944e-38, %v392
        %v394 = vsel %vm391, %v393, %v389
        %v395 = vmul.f32 1.0, %v394
        %397 = vset.pattern.permute.xlu0 0
        %398 = vperm.xlu0 %397, %v380
        %v399 = vpop.permute.xlu0 %398
        %402 = vset.pattern.permute.xlu0 0
        %403 = vperm.xlu0 %402, %v395
        %v404 = vpop.permute.xlu0 %403
        %v406 = vmul.f32 %v245, %v399
        %v407 = vmul.f32 %v246, %v399
        %v408 = vmul.f32 %v247, %v404
        %v409 = vmul.f32 %v248, %v404
        %410 = vst [vmem:[%s244] sm:$0xff] %v406
        %411 = vst [vmem:[%s244 + $0x8] sm:$0xff] %v407
        %412 = vst [vmem:[%s244 + $0x10] sm:$0xff] %v408
        %413 = vst [vmem:[%s244 + $0x18] sm:$0xff] %v409
        %s414 = sand.u32 %s140, 1
        %s415 = scalar_lea.sflag [#allocation4], %s414
        %s416 = sand.u32 %s140, 1
        %s417 = smul.addr %s416, 32
        %s418 = scalar_lea.vmem [#allocation5], %s417
        // Predicated region
        $region45: #{tpu_custom_call.1} parent=39 // pred_check
          %p419 = pneg %p150
        $region46: #{tpu_custom_call.1} parent=39 // pred_check_branch
          %421 = sbr.rel (%p419) target = $region48
        $region47: #{tpu_custom_call.1} parent=39 // pred_region
          %423 = vsyncadd %s415, 0
          %s424 = smul.addr %s22, 4
          %s425 = smul.addr %s424, 8
          %s426 = scalar_lea.hbm %s5, %s425
          %s427 = sshll.u32 %s418, 4
          %s428 = int_to_ptr.vmem [resolvable:$true] %s427
          %s429 = sshll.u32 %s426, 4
          %s430 = int_to_ptr.hbm [resolvable:$true] %s429
          %435 = dma.vmem_to_hbm [thread:$0]  %s428, 512, %s430, %s415, 256, 256, 16
        $region48: #{tpu_custom_call.1} parent=39 // pred_fallthru
          _
      $region40: #{tpu_custom_call.1} parent=5 // pred_fallthru
        _
      %p436 = scmp.le.s32.totalorder 2, %s17
      // Predicated region
      $region49: #{tpu_custom_call.1} parent=5 // pred_check
        %p437 = pneg %p436
      $region50: #{tpu_custom_call.1} parent=5 // pred_check_branch
        %439 = sbr.rel (%p437) target = $region52
      $region51: #{tpu_custom_call.1} parent=5 // pred_region
        %s440 = ssub.s32 %s17, 2
        // Predicated region
        $region53: #{tpu_custom_call.1} parent=51 // pred_check
          %p441 = pneg %p156
        $region54: #{tpu_custom_call.1} parent=51 // pred_check_branch
          %443 = sbr.rel (%p441) target = $region56
        $region55: #{tpu_custom_call.1} parent=51 // pred_region
          %s444 = sand.u32 %s141, 1
          %s445 = scalar_lea.sflag [#allocation4], %s444
          %s446 = sand.u32 %s141, 1
          %s447 = smul.addr %s446, 32
          %s448 = scalar_lea.vmem [#allocation5], %s447
          %450 = dma.done %s445, 512
        $region56: #{tpu_custom_call.1} parent=51 // pred_fallthru
          _
      $region52: #{tpu_custom_call.1} parent=5 // pred_fallthru
        _
    $region6: #{tpu_custom_call.1} parent=1 // loop_footer
      %s21 = sadd.s32 1, %s17
    $region7: #{tpu_custom_call.1} parent=1 // loop_footer_branch
      %16 = sbr.rel target = $region3
    $region8: #{tpu_custom_call.1} parent=1 // loop_exit
      _
    %451 = vsyncpa [#allocation3], 1
    %s452 = scalar_lea.sflag [#allocation3], 1
    %453 = vsyncpa %s452, 1
    %454 = vsyncpa [#allocation4], 1
    %s455 = scalar_lea.sflag [#allocation4], 1
    %456 = vsyncpa %s455, 1

</llo_original>
